<compile_context>
chip_gen: v6e
topology: v6e:2x2x1
jax: 0.10.0
libtpu: 0.0.40
codegen_flags: <defaults>
</compile_context>

<pallas_src>
import functools

import jax
import jax.numpy as jnp
from jax import lax
from jax.experimental import pallas as pl
from jax.experimental.pallas import tpu as pltpu


def _mlp_kernel(x_ref, w1_ref, b1_ref, w2_ref, b2_ref, w3_ref, b3_ref, o_ref,
                *, activation, elementwise_dtype):
    """Whole MLP forward for one batch tile, fully resident in VMEM.

    x_ref : (TB, D)  input tile, native (batch, feature) layout, f32
    w1    : (H, D)   b1: (H, 1)   (PyTorch (out, in) layout)
    w2    : (H, H)   b2: (H, 1)
    w3    : (O, H)   b3: (O, 1)
    o_ref : (O, TB)  lane-dense output slab, f32
    """
    if activation == "tanh":
        act = jnp.tanh
    else:  # "relu"
        act = lambda t: jnp.maximum(t, 0.0)

    w_dt = w1_ref.dtype            # MXU input dtype (bf16)
    ew = elementwise_dtype         # VPU/EUP dtype (bf16 on v6e/v7x, f32 on v5e)

    # Cast to bf16 in-kernel; fold the (TB, D) -> (D, TB) swap into the matmul
    # by contracting the D axis of both operands (no separate transpose HLO).
    x = x_ref[...].astype(w_dt)                                         # (TB, D)
    h1 = lax.dot_general(w1_ref[...], x, (((1,), (1,)), ((), ())),
                         preferred_element_type=jnp.float32)            # (H, TB) f32
    h1 = act(h1.astype(ew) + b1_ref[...].astype(ew))

    h2 = jnp.dot(w2_ref[...], h1.astype(w_dt),
                 preferred_element_type=jnp.float32)                    # (H, TB) f32
    h2 = act(h2.astype(ew) + b2_ref[...].astype(ew))

    v = jnp.dot(w3_ref[...], h2.astype(w_dt),
                preferred_element_type=jnp.float32)                     # (O, TB) f32
    o_ref[...] = (v + b3_ref[...]).astype(o_ref.dtype)                  # f32 head bias


def _default_elementwise_dtype():
    """bf16 elementwise only where the VPU/EUP support it (v6e / v7x)."""
    try:
        kind = jax.devices()[0].device_kind.lower()
    except Exception:
        kind = ""
    if "v6" in kind or "v7" in kind:
        return jnp.bfloat16
    return jnp.float32


def _pick_tile_b(B):
    """Batch tile heuristic: big tiles to amortize per-step overhead, multiples
    of 256 for the v6e/v7x MXU result width, and keep >= 2 grid steps when the
    batch allows so both v7x TensorCores get work."""
    if B < 128:
        return B                     # tiny batch: single full-extent block
    for cand in (2048, 1024, 512, 256):
        if B >= 2 * cand:
            return cand
    return 256 if B >= 256 else 128


def mlp_forward(x, params, *, activation="tanh", tile_b=None,
                compute_dtype=jnp.bfloat16, elementwise_dtype=None):
    """Run the 3-layer MLP (PPO value head or DQN q head) with a Pallas TPU kernel.

    x      : (B, D) float32, native layout (no wrapper-side transpose/pad/cast)
    params : dict with PyTorch-layout weights:
             w1 (H,D), b1 (H,), w2 (H,H), b2 (H,), w3 (O,H), b3 (O,)
    Returns (B, O) float32 — matches the PyTorch module's output.
    """
    B, D = x.shape
    H, D_w = params["w1"].shape
    assert D_w == D, "obs_dim mismatch between x and w1"
    O = params["w3"].shape[0]

    if tile_b is None:
        tile_b = _pick_tile_b(B)
    if elementwise_dtype is None:
        elementwise_dtype = _default_elementwise_dtype()

    n_tiles = pl.cdiv(B, tile_b)     # ragged tail handled by Pallas masking

    w1 = params["w1"].astype(compute_dtype)                 # (H, D)
    w2 = params["w2"].astype(compute_dtype)                 # (H, H)
    w3 = params["w3"].astype(compute_dtype)                 # (O, H)
    b1 = params["b1"].reshape(H, 1).astype(jnp.float32)
    b2 = params["b2"].reshape(H, 1).astype(jnp.float32)
    b3 = params["b3"].reshape(O, 1).astype(jnp.float32)

    def resident(arr):
        # Full-array block, same block index every grid step -> stays resident.
        nd = arr.ndim
        return pl.BlockSpec(arr.shape, lambda i, _nd=nd: (0,) * _nd)

    flops = 2 * B * (D * H + H * H + H * O)
    transcendentals = (2 * B * H) if activation == "tanh" else 0
    bytes_accessed = int(
        x.size * x.dtype.itemsize
        + sum(a.size * a.dtype.itemsize for a in (w1, w2, w3, b1, b2, b3))
        + B * O * 4)

    out = pl.pallas_call(
        functools.partial(_mlp_kernel, activation=activation,
                          elementwise_dtype=elementwise_dtype),
        out_shape=jax.ShapeDtypeStruct((O, B), jnp.float32),
        grid_spec=pltpu.PrefetchScalarGridSpec(
            num_scalar_prefetch=0,
            grid=(n_tiles,),
            in_specs=[
                pl.BlockSpec((tile_b, D), lambda i: (i, 0)),   # native x layout
                resident(w1), resident(b1),
                resident(w2), resident(b2),
                resident(w3), resident(b3),
            ],
            out_specs=pl.BlockSpec((O, tile_b), lambda i: (0, i)),
        ),
        compiler_params=pltpu.CompilerParams(
            dimension_semantics=("parallel",),   # shards across TCs on v7x
        ),
        cost_estimate=pl.CostEstimate(
            flops=flops,
            transcendentals=transcendentals,
            bytes_accessed=bytes_accessed,
        ),
    )(x, w1, b1, w2, b2, w3, b3)

    return out.T   # (B, O)


def init_params(key, obs_dim, hidden, out_dim):
    """Deterministic synthetic parameters, PyTorch-Linear-style uniform init,
    stored in PyTorch-native (out_features, in_features) layout."""
    ks = jax.random.split(key, 6)

    def lin(kw, kb, fan_in, fan_out):
        bound = 1.0 / jnp.sqrt(jnp.float32(fan_in))
        w = jax.random.uniform(kw, (fan_out, fan_in), jnp.float32, -bound, bound)
        b = jax.random.uniform(kb, (fan_out,), jnp.float32, -bound, bound)
        return w, b

    w1, b1 = lin(ks[0], ks[1], obs_dim, hidden)
    w2, b2 = lin(ks[2], ks[3], hidden, hidden)
    w3, b3 = lin(ks[4], ks[5], hidden, out_dim)
    return dict(w1=w1, b1=b1, w2=w2, b2=b2, w3=w3, b3=b3)


def reference_forward(x, p, activation="tanh"):
    act = jnp.tanh if activation == "tanh" else (lambda t: jnp.maximum(t, 0.0))
    h1 = act(x @ p["w1"].T + p["b1"])
    h2 = act(h1 @ p["w2"].T + p["b2"])
    return h2 @ p["w3"].T + p["b3"]


if __name__ == "__main__":
    # TODO(synk): real checkpoint loading (PPO.load / DQN.load) is out of scope;
    # weights are synthesized deterministically with the same shapes/init style.
    key = jax.random.PRNGKey(0)
    k_x, k_ppo, k_dqn = jax.random.split(key, 3)

    B, OBS_DIM, HIDDEN, N_ACTIONS = 512, 32, 64, 4
    x = jax.random.normal(k_x, (B, OBS_DIM), jnp.float32)

    # PPO value head: [Linear, Tanh, Linear, Tanh, Linear(64,1)]
    ppo_params = init_params(k_ppo, OBS_DIM, HIDDEN, 1)
    value = mlp_forward(x, ppo_params, activation="tanh")
    value = jax.block_until_ready(value)
    value_ref = reference_forward(x, ppo_params, activation="tanh")
    assert value.shape == (B, 1)
    assert jnp.allclose(value, value_ref, atol=3e-2, rtol=3e-2), "PPO mismatch vs reference"

    # DQN q head: [Linear, ReLU, Linear, ReLU, Linear(64, n_actions)]
    dqn_params = init_params(k_dqn, OBS_DIM, HIDDEN, N_ACTIONS)
    qvals = mlp_forward(x, dqn_params, activation="relu")
    qvals = jax.block_until_ready(qvals)
    qvals_ref = reference_forward(x, dqn_params, activation="relu")
    assert qvals.shape == (B, N_ACTIONS)
    assert jnp.allclose(qvals, qvals_ref, atol=3e-2, rtol=3e-2), "DQN mismatch vs reference"

    print("KERNEL_OK")
</pallas_src>

<mosaic_0001>
module attributes {stable_mosaic.version = 11 : i64} {
  func.func @_mlp_kernel(%arg0: i32, %arg1: memref<256x32xf32, #tpu.memory_space<vmem>>, %arg2: memref<64x32xbf16, #tpu.memory_space<vmem>>, %arg3: memref<64x1xf32, #tpu.memory_space<vmem>>, %arg4: memref<64x64xbf16, #tpu.memory_space<vmem>>, %arg5: memref<64x1xf32, #tpu.memory_space<vmem>>, %arg6: memref<1x64xbf16, #tpu.memory_space<vmem>>, %arg7: memref<1x1xf32, #tpu.memory_space<vmem>>, %arg8: memref<1x256xf32, #tpu.memory_space<vmem>>) attributes {dimension_semantics = [#tpu.dimension_semantics<parallel>], iteration_bounds = array<i64: 2>, scalar_prefetch = 0 : i64, scratch_operands = 0 : i64, tpu.core_type = #tpu.core_type<tc>, window_params = [{transform_indices = @transform_0, window_bounds = array<i64: 256, 32>}, {pipeline_mode = #tpu.pipeline_mode<synchronous>, transform_indices = @transform_1, window_bounds = array<i64: 64, 32>}, {pipeline_mode = #tpu.pipeline_mode<synchronous>, transform_indices = @transform_2, window_bounds = array<i64: 64, 1>}, {pipeline_mode = #tpu.pipeline_mode<synchronous>, transform_indices = @transform_3, window_bounds = array<i64: 64, 64>}, {pipeline_mode = #tpu.pipeline_mode<synchronous>, transform_indices = @transform_4, window_bounds = array<i64: 64, 1>}, {pipeline_mode = #tpu.pipeline_mode<synchronous>, transform_indices = @transform_5, window_bounds = array<i64: 1, 64>}, {pipeline_mode = #tpu.pipeline_mode<synchronous>, transform_indices = @transform_6, window_bounds = array<i64: 1, 1>}, {transform_indices = @transform_7, window_bounds = array<i64: 1, 256>}]} {
    %c0 = arith.constant 0 : index
    %c0_0 = arith.constant 0 : index
    %0 = vector.load %arg1[%c0, %c0_0] : memref<256x32xf32, #tpu.memory_space<vmem>>, vector<256x32xf32>
    %1 = arith.truncf %0 : vector<256x32xf32> to vector<256x32xbf16>
    %c0_1 = arith.constant 0 : index
    %c0_2 = arith.constant 0 : index
    %2 = vector.load %arg2[%c0_1, %c0_2] : memref<64x32xbf16, #tpu.memory_space<vmem>>, vector<64x32xbf16>
    %cst = arith.constant dense<0.000000e+00> : vector<64x256xf32>
    %3 = tpu.matmul %2, %1, %cst {dimension_numbers = #tpu.dot_dimension_numbers<[1], [1], [0], [0], [0, 0, 1, 0], [], []>} : vector<64x32xbf16>, vector<256x32xbf16>, vector<64x256xf32> -> vector<64x256xf32>
    %c0_3 = arith.constant 0 : index
    %c0_4 = arith.constant 0 : index
    %4 = vector.load %arg3[%c0_3, %c0_4] : memref<64x1xf32, #tpu.memory_space<vmem>>, vector<64x1xf32>
    %5 = vector.broadcast %4 : vector<64x1xf32> to vector<64x256xf32>
    %6 = arith.addf %3, %5 : vector<64x256xf32>
    %7 = math.tanh %6 : vector<64x256xf32>
    %c0_5 = arith.constant 0 : index
    %c0_6 = arith.constant 0 : index
    %8 = vector.load %arg4[%c0_5, %c0_6] : memref<64x64xbf16, #tpu.memory_space<vmem>>, vector<64x64xbf16>
    %9 = arith.truncf %7 : vector<64x256xf32> to vector<64x256xbf16>
    %cst_7 = arith.constant dense<0.000000e+00> : vector<64x256xf32>
    %10 = tpu.matmul %8, %9, %cst_7 {dimension_numbers = #tpu.dot_dimension_numbers<[1], [0], [0], [1], [0, 0, 1, 1], [], []>} : vector<64x64xbf16>, vector<64x256xbf16>, vector<64x256xf32> -> vector<64x256xf32>
    %c0_8 = arith.constant 0 : index
    %c0_9 = arith.constant 0 : index
    %11 = vector.load %arg5[%c0_8, %c0_9] : memref<64x1xf32, #tpu.memory_space<vmem>>, vector<64x1xf32>
    %12 = vector.broadcast %11 : vector<64x1xf32> to vector<64x256xf32>
    %13 = arith.addf %10, %12 : vector<64x256xf32>
    %14 = math.tanh %13 : vector<64x256xf32>
    %c0_10 = arith.constant 0 : index
    %c0_11 = arith.constant 0 : index
    %15 = vector.load %arg6[%c0_10, %c0_11] : memref<1x64xbf16, #tpu.memory_space<vmem>>, vector<1x64xbf16>
    %16 = arith.truncf %14 : vector<64x256xf32> to vector<64x256xbf16>
    %cst_12 = arith.constant dense<0.000000e+00> : vector<1x256xf32>
    %17 = tpu.matmul %15, %16, %cst_12 {dimension_numbers = #tpu.dot_dimension_numbers<[1], [0], [0], [1], [0, 0, 1, 1], [], []>} : vector<1x64xbf16>, vector<64x256xbf16>, vector<1x256xf32> -> vector<1x256xf32>
    %c0_13 = arith.constant 0 : index
    %c0_14 = arith.constant 0 : index
    %18 = vector.load %arg7[%c0_13, %c0_14] : memref<1x1xf32, #tpu.memory_space<vmem>>, vector<1x1xf32>
    %19 = vector.broadcast %18 : vector<1x1xf32> to vector<1x256xf32>
    %20 = arith.addf %17, %19 : vector<1x256xf32>
    %c0_15 = arith.constant 0 : index
    %c0_16 = arith.constant 0 : index
    %21 = vector.load %arg8[%c0_15, %c0_16] : memref<1x256xf32, #tpu.memory_space<vmem>>, vector<1x256xf32>
    tpu.vector_store %arg8[%c0_15, %c0_16], %20 {strides = array<i32>} : memref<1x256xf32, #tpu.memory_space<vmem>>, vector<1x256xf32>,
    return
  }
  func.func @transform_0(%arg0: i32) -> (i32, i32) {
    %c0_i32 = arith.constant 0 : i32
    %c0_i32_0 = arith.constant 0 : i32
    return %arg0, %c0_i32 : i32, i32
  }
  func.func @transform_1(%arg0: i32) -> (i32, i32) {
    %c0_i32 = arith.constant 0 : i32
    %c0_i32_0 = arith.constant 0 : i32
    %c0_i32_1 = arith.constant 0 : i32
    return %c0_i32, %c0_i32_0 : i32, i32
  }
  func.func @transform_2(%arg0: i32) -> (i32, i32) {
    %c0_i32 = arith.constant 0 : i32
    %c0_i32_0 = arith.constant 0 : i32
    %c0_i32_1 = arith.constant 0 : i32
    return %c0_i32, %c0_i32_0 : i32, i32
  }
  func.func @transform_3(%arg0: i32) -> (i32, i32) {
    %c0_i32 = arith.constant 0 : i32
    %c0_i32_0 = arith.constant 0 : i32
    %c0_i32_1 = arith.constant 0 : i32
    return %c0_i32, %c0_i32_0 : i32, i32
  }
  func.func @transform_4(%arg0: i32) -> (i32, i32) {
    %c0_i32 = arith.constant 0 : i32
    %c0_i32_0 = arith.constant 0 : i32
    %c0_i32_1 = arith.constant 0 : i32
    return %c0_i32, %c0_i32_0 : i32, i32
  }
  func.func @transform_5(%arg0: i32) -> (i32, i32) {
    %c0_i32 = arith.constant 0 : i32
    %c0_i32_0 = arith.constant 0 : i32
    %c0_i32_1 = arith.constant 0 : i32
    return %c0_i32, %c0_i32_0 : i32, i32
  }
  func.func @transform_6(%arg0: i32) -> (i32, i32) {
    %c0_i32 = arith.constant 0 : i32
    %c0_i32_0 = arith.constant 0 : i32
    %c0_i32_1 = arith.constant 0 : i32
    return %c0_i32, %c0_i32_0 : i32, i32
  }
  func.func @transform_7(%arg0: i32) -> (i32, i32) {
    %c0_i32 = arith.constant 0 : i32
    %c0_i32_0 = arith.constant 0 : i32
    return %c0_i32, %arg0 : i32, i32
  }
}

</mosaic_0001>

<llo_original>
// kernel: tpu_custom_call.1
$region0: #{tpu_custom_call.1}
  #allocation0 [shape = 'u32[]', space=smem, size = 0x4, offset = 0x4, fixed_abs, tag = 'smem constant byte address 0x4 - core index']
  #allocation1 [shape = 'u32[144,128]{1,0:T(1,128)}', space=vmem, size = 0x12000, scoped, tag = 'internal scratch']
  #allocation2 [shape = 'f32[1,1]{1,0:T(1,128)S(1)}', space=vmem, size = 0x200, scoped, tag = 'scoped memory for tpu_custom_call.1']
  %s0 = inlined_call_operand.vmem [shape: f32[512,32], index: 0, kind: input, shape index: {}]
  %s1 = inlined_call_operand.vmem [shape: bf16[64,32], index: 1, kind: input, shape index: {}]
  %s2 = inlined_call_operand.vmem [shape: f32[64,1], index: 2, kind: input, shape index: {}]
  %s3 = inlined_call_operand.vmem [shape: bf16[64,64], index: 3, kind: input, shape index: {}]
  %s4 = inlined_call_operand.vmem [shape: f32[64,1], index: 4, kind: input, shape index: {}]
  %s5 = inlined_call_operand.vmem [shape: bf16[1,64], index: 5, kind: input, shape index: {}]
  %s6 = inlined_call_operand.<no memory space> [shape: f32[1,1], index: 6, kind: input, shape index: {}]
  %s7 = inlined_call_operand.hbm [shape: f32[1,512], index: 7, kind: output, shape index: {}]
  %s8 = sld [smem:[#allocation0]]
  $region61: #{tpu_custom_call.1} parent=0
    _
  %s10 = ssub.s32 1, %s8
  %s11 = scalar_select 0, %s10, %s8
  %v12 = vstv %s6
  %13 = vst [vmem:[#allocation2] sm:$0x1] %v12
  $region1: #{tpu_custom_call.1} parent=0
    #allocation3 [shape = 'u8[2048]{0}', space=vmem, size = 0x800, scoped, tag = 'output window, operand 0']
    #allocation4 [shape = 's32[2]{0}', space=sflag, size = 0x8, scoped, tag = 'scoped memory for tpu_custom_call.1']
    %14 = vsyncpa [#allocation4], 0
    %s15 = scalar_lea.sflag [#allocation4], 1
    %16 = vsyncpa %s15, 0
    loop: start=0, step=1, limit=4
    $region2: #{tpu_custom_call.1} parent=1 // loop_pre_header
      _
    $region3: #{tpu_custom_call.1} parent=1 // loop_header
      %s18 = sphi 0, %s22
      %p19 = scmp.ge.s32.totalorder %s18, 4
      %s28 = sphi 0, %s30
      %s31 = sphi 0, %s28
      %s32 = sphi 0, %s31
      %s48 = sphi 0, %s32
      %s52 = sphi 0, %s52
      %s54 = sphi 0, %s52
      %s55 = sphi 0, %s54
      %s69 = sphi 0, %s55
      %s73 = sphi 0, %s73
      %s75 = sphi 0, %s73
      %s76 = sphi 0, %s75
      %s90 = sphi 0, %s76
      %s94 = sphi 0, %s94
      %s96 = sphi 0, %s94
      %s97 = sphi 0, %s96
      %s111 = sphi 0, %s97
      %s115 = sphi 0, %s115
      %s117 = sphi 0, %s115
      %s118 = sphi 0, %s117
      %s132 = sphi 0, %s118
      %s136 = sphi 0, %s136
      %s138 = sphi 0, %s136
      %s139 = sphi 0, %s138
      %s153 = sphi 0, %s139
      %s157 = sphi 0, %s157
      %s159 = sphi 0, %s157
      %s160 = sphi 0, %s159
      %s174 = sphi 0, %s160
      %s180 = sphi 0, %s182
      %s183 = sphi 0, %s180
      %s184 = sphi 0, %s183
      %s200 = sphi 0, %s184
    $region4: #{tpu_custom_call.1} parent=1 // loop_header_branch
      %21 = sbr.rel (%p19) target = $region8
    $region5: #{tpu_custom_call.1} parent=1 // loop_body
      %s23 = ssub.s32 %s18, 1
      %s24 = ssub.s32 %s18, 2
      %s25 = sadd.s32 %s18, 1
      %s26 = ssub.s32 %s18, %s25
      %p27 = scmp.eq.s32.totalorder %s26, 0
      %s29 = sadd.s32 %s28, 1
      %s30 = scalar_select %p27, %s28, %s29
      %p33 = pneg %p27
      %p34 = scmp.eq.s32.totalorder %s18, 1
      %p35 = por %p33, %p34
      %p36 = scmp.ne.s32.totalorder %s28, %s31
      %p37 = scmp.eq.s32.totalorder %s18, 0
      %p38 = por %p36, %p37
      %p39 = scmp.ne.s32.totalorder %s28, %s31
      %p40 = scmp.eq.s32.totalorder %s23, 1
      %p41 = por %p39, %p40
      %p42 = scmp.ne.s32.totalorder %s31, %s32
      %p43 = scmp.eq.s32.totalorder %s23, 0
      %p44 = por %p42, %p43
      %p45 = scmp.ne.s32.totalorder %s31, %s32
      %p46 = scmp.eq.s32.totalorder %s24, 1
      %p47 = por %p45, %p46
      %p49 = scmp.ne.s32.totalorder %s32, %s48
      %p50 = scmp.eq.s32.totalorder %s24, 0
      %p51 = por %p49, %p50
      %s53 = sadd.s32 %s52, 1
      %p56 = scmp.eq.s32.totalorder %s18, 1
      %p57 = scmp.ne.s32.totalorder %s52, %s54
      %p58 = scmp.eq.s32.totalorder %s18, 0
      %p59 = por %p57, %p58
      %p60 = scmp.ne.s32.totalorder %s52, %s54
      %p61 = scmp.eq.s32.totalorder %s23, 1
      %p62 = por %p60, %p61
      %p63 = scmp.ne.s32.totalorder %s54, %s55
      %p64 = scmp.eq.s32.totalorder %s23, 0
      %p65 = por %p63, %p64
      %p66 = scmp.ne.s32.totalorder %s54, %s55
      %p67 = scmp.eq.s32.totalorder %s24, 1
      %p68 = por %p66, %p67
      %p70 = scmp.ne.s32.totalorder %s55, %s69
      %p71 = scmp.eq.s32.totalorder %s24, 0
      %p72 = por %p70, %p71
      %s74 = sadd.s32 %s73, 1
      %p77 = scmp.eq.s32.totalorder %s18, 1
      %p78 = scmp.ne.s32.totalorder %s73, %s75
      %p79 = scmp.eq.s32.totalorder %s18, 0
      %p80 = por %p78, %p79
      %p81 = scmp.ne.s32.totalorder %s73, %s75
      %p82 = scmp.eq.s32.totalorder %s23, 1
      %p83 = por %p81, %p82
      %p84 = scmp.ne.s32.totalorder %s75, %s76
      %p85 = scmp.eq.s32.totalorder %s23, 0
      %p86 = por %p84, %p85
      %p87 = scmp.ne.s32.totalorder %s75, %s76
      %p88 = scmp.eq.s32.totalorder %s24, 1
      %p89 = por %p87, %p88
      %p91 = scmp.ne.s32.totalorder %s76, %s90
      %p92 = scmp.eq.s32.totalorder %s24, 0
      %p93 = por %p91, %p92
      %s95 = sadd.s32 %s94, 1
      %p98 = scmp.eq.s32.totalorder %s18, 1
      %p99 = scmp.ne.s32.totalorder %s94, %s96
      %p100 = scmp.eq.s32.totalorder %s18, 0
      %p101 = por %p99, %p100
      %p102 = scmp.ne.s32.totalorder %s94, %s96
      %p103 = scmp.eq.s32.totalorder %s23, 1
      %p104 = por %p102, %p103
      %p105 = scmp.ne.s32.totalorder %s96, %s97
      %p106 = scmp.eq.s32.totalorder %s23, 0
      %p107 = por %p105, %p106
      %p108 = scmp.ne.s32.totalorder %s96, %s97
      %p109 = scmp.eq.s32.totalorder %s24, 1
      %p110 = por %p108, %p109
      %p112 = scmp.ne.s32.totalorder %s97, %s111
      %p113 = scmp.eq.s32.totalorder %s24, 0
      %p114 = por %p112, %p113
      %s116 = sadd.s32 %s115, 1
      %p119 = scmp.eq.s32.totalorder %s18, 1
      %p120 = scmp.ne.s32.totalorder %s115, %s117
      %p121 = scmp.eq.s32.totalorder %s18, 0
      %p122 = por %p120, %p121
      %p123 = scmp.ne.s32.totalorder %s115, %s117
      %p124 = scmp.eq.s32.totalorder %s23, 1
      %p125 = por %p123, %p124
      %p126 = scmp.ne.s32.totalorder %s117, %s118
      %p127 = scmp.eq.s32.totalorder %s23, 0
      %p128 = por %p126, %p127
      %p129 = scmp.ne.s32.totalorder %s117, %s118
      %p130 = scmp.eq.s32.totalorder %s24, 1
      %p131 = por %p129, %p130
      %p133 = scmp.ne.s32.totalorder %s118, %s132
      %p134 = scmp.eq.s32.totalorder %s24, 0
      %p135 = por %p133, %p134
      %s137 = sadd.s32 %s136, 1
      %p140 = scmp.eq.s32.totalorder %s18, 1
      %p141 = scmp.ne.s32.totalorder %s136, %s138
      %p142 = scmp.eq.s32.totalorder %s18, 0
      %p143 = por %p141, %p142
      %p144 = scmp.ne.s32.totalorder %s136, %s138
      %p145 = scmp.eq.s32.totalorder %s23, 1
      %p146 = por %p144, %p145
      %p147 = scmp.ne.s32.totalorder %s138, %s139
      %p148 = scmp.eq.s32.totalorder %s23, 0
      %p149 = por %p147, %p148
      %p150 = scmp.ne.s32.totalorder %s138, %s139
      %p151 = scmp.eq.s32.totalorder %s24, 1
      %p152 = por %p150, %p151
      %p154 = scmp.ne.s32.totalorder %s139, %s153
      %p155 = scmp.eq.s32.totalorder %s24, 0
      %p156 = por %p154, %p155
      %s158 = sadd.s32 %s157, 1
      %p161 = scmp.eq.s32.totalorder %s18, 1
      %p162 = scmp.ne.s32.totalorder %s157, %s159
      %p163 = scmp.eq.s32.totalorder %s18, 0
      %p164 = por %p162, %p163
      %p165 = scmp.ne.s32.totalorder %s157, %s159
      %p166 = scmp.eq.s32.totalorder %s23, 1
      %p167 = por %p165, %p166
      %p168 = scmp.ne.s32.totalorder %s159, %s160
      %p169 = scmp.eq.s32.totalorder %s23, 0
      %p170 = por %p168, %p169
      %p171 = scmp.ne.s32.totalorder %s159, %s160
      %p172 = scmp.eq.s32.totalorder %s24, 1
      %p173 = por %p171, %p172
      %p175 = scmp.ne.s32.totalorder %s160, %s174
      %p176 = scmp.eq.s32.totalorder %s24, 0
      %p177 = por %p175, %p176
      %s178 = ssub.s32 %s18, %s25
      %p179 = scmp.eq.s32.totalorder %s178, 0
      %s181 = sadd.s32 %s180, 1
      %s182 = scalar_select %p179, %s180, %s181
      %p185 = pneg %p179
      %p186 = scmp.eq.s32.totalorder %s18, 1
      %p187 = por %p185, %p186
      %p188 = scmp.ne.s32.totalorder %s180, %s183
      %p189 = scmp.eq.s32.totalorder %s18, 0
      %p190 = por %p188, %p189
      %p191 = scmp.ne.s32.totalorder %s180, %s183
      %p192 = scmp.eq.s32.totalorder %s23, 1
      %p193 = por %p191, %p192
      %p194 = scmp.ne.s32.totalorder %s183, %s184
      %p195 = scmp.eq.s32.totalorder %s23, 0
      %p196 = por %p194, %p195
      %p197 = scmp.ne.s32.totalorder %s183, %s184
      %p198 = scmp.eq.s32.totalorder %s24, 1
      %p199 = por %p197, %p198
      %p201 = scmp.ne.s32.totalorder %s184, %s200
      %p202 = scmp.eq.s32.totalorder %s24, 0
      %p203 = por %p201, %p202
      %p204 = scmp.le.s32.totalorder 1, %s18
      %p205 = scmp.lt.s32.totalorder %s18, 3
      %p206 = pnand %p204, %p205
      %p207 = pneg %p206
      // Predicated region
      $region9: #{tpu_custom_call.1} parent=5 // pred_check
        _
      $region10: #{tpu_custom_call.1} parent=5 // pred_check_branch
        %209 = sbr.rel (%p206) target = $region12
      $region11: #{tpu_custom_call.1} parent=5 // pred_region
        %s210 = ssub.s32 %s18, 1
        // Predicated region
        $region13: #{tpu_custom_call.1} parent=11 // pred_check
          %p211 = pneg %p65
        $region14: #{tpu_custom_call.1} parent=11 // pred_check_branch
          %213 = sbr.rel (%p211) target = $region16
        $region15: #{tpu_custom_call.1} parent=11 // pred_region
          _
        $region16: #{tpu_custom_call.1} parent=11 // pred_fallthru
          _
        // Predicated region
        $region17: #{tpu_custom_call.1} parent=11 // pred_check
          %p214 = pneg %p86
        $region18: #{tpu_custom_call.1} parent=11 // pred_check_branch
          %216 = sbr.rel (%p214) target = $region20
        $region19: #{tpu_custom_call.1} parent=11 // pred_region
          _
        $region20: #{tpu_custom_call.1} parent=11 // pred_fallthru
          _
        // Predicated region
        $region21: #{tpu_custom_call.1} parent=11 // pred_check
          %p217 = pneg %p107
        $region22: #{tpu_custom_call.1} parent=11 // pred_check_branch
          %219 = sbr.rel (%p217) target = $region24
        $region23: #{tpu_custom_call.1} parent=11 // pred_region
          _
        $region24: #{tpu_custom_call.1} parent=11 // pred_fallthru
          _
        // Predicated region
        $region25: #{tpu_custom_call.1} parent=11 // pred_check
          %p220 = pneg %p128
        $region26: #{tpu_custom_call.1} parent=11 // pred_check_branch
          %222 = sbr.rel (%p220) target = $region28
        $region27: #{tpu_custom_call.1} parent=11 // pred_region
          _
        $region28: #{tpu_custom_call.1} parent=11 // pred_fallthru
          _
        // Predicated region
        $region29: #{tpu_custom_call.1} parent=11 // pred_check
          %p223 = pneg %p149
        $region30: #{tpu_custom_call.1} parent=11 // pred_check_branch
          %225 = sbr.rel (%p223) target = $region32
        $region31: #{tpu_custom_call.1} parent=11 // pred_region
          _
        $region32: #{tpu_custom_call.1} parent=11 // pred_fallthru
          _
        // Predicated region
        $region33: #{tpu_custom_call.1} parent=11 // pred_check
          %p226 = pneg %p170
        $region34: #{tpu_custom_call.1} parent=11 // pred_check_branch
          %228 = sbr.rel (%p226) target = $region36
        $region35: #{tpu_custom_call.1} parent=11 // pred_region
          _
        $region36: #{tpu_custom_call.1} parent=11 // pred_fallthru
          _
      $region12: #{tpu_custom_call.1} parent=5 // pred_fallthru
        _
      %p229 = scmp.lt.s32.totalorder %s18, 2
      // Predicated region
      $region37: #{tpu_custom_call.1} parent=5 // pred_check
        %p230 = pneg %p229
      $region38: #{tpu_custom_call.1} parent=5 // pred_check_branch
        %232 = sbr.rel (%p230) target = $region40
      $region39: #{tpu_custom_call.1} parent=5 // pred_region
        // Predicated region
        $region41: #{tpu_custom_call.1} parent=39 // pred_check
          %p233 = pneg %p38
        $region42: #{tpu_custom_call.1} parent=39 // pred_check_branch
          %235 = sbr.rel (%p233) target = $region44
        $region43: #{tpu_custom_call.1} parent=39 // pred_region
          %s236 = smul.u32 32, %s18
          %p237 = scmp.lt.s32.totalorder %s236, 63
          %s238 = scalar_select %p237, %s236, 63
          %s239 = smul.addr %s238, 8
          %s240 = scalar_lea.vmem %s0, %s239
          %s241 = smul.u32 32, %s18
        $region44: #{tpu_custom_call.1} parent=39 // pred_fallthru
          _
      $region40: #{tpu_custom_call.1} parent=5 // pred_fallthru
        _
      %p242 = scmp.le.s32.totalorder 1, %s18
      %p243 = scmp.lt.s32.totalorder %s18, 3
      %p244 = pnand %p242, %p243
      %p245 = pneg %p244
      // Predicated region
      $region45: #{tpu_custom_call.1} parent=5 // pred_check
        _
      $region46: #{tpu_custom_call.1} parent=5 // pred_check_branch
        %247 = sbr.rel (%p244) target = $region48
      $region47: #{tpu_custom_call.1} parent=5 // pred_region
        %s248 = ssub.s32 %s18, 1
        %s249 = smul.u32 32, %s23
        %p250 = scmp.lt.s32.totalorder %s249, 63
        %s251 = scalar_select %p250, %s249, 63
        %s252 = smul.addr %s251, 8
        %s253 = scalar_lea.vmem %s0, %s252
        %p254 = pneg %p44
        %p255 = pneg %p41
        %p256 = pneg %p65
        %p257 = pneg %p62
        %p258 = pneg %p86
        %p259 = pneg %p83
        %p260 = pneg %p107
        %p261 = pneg %p104
        %p262 = pneg %p128
        %p263 = pneg %p125
        %p264 = pneg %p149
        %p265 = pneg %p146
        %p266 = pneg %p170
        %p267 = pneg %p167
        %p268 = pneg %p196
        %p269 = pneg %p193
        %s270 = sand.u32 %s183, 1
        %s271 = scalar_lea.sflag [#allocation4], %s270
        %s272 = sand.u32 %s183, 1
        %s273 = smul.addr %s272, 2
        %s274 = scalar_lea.vmem [#allocation3], %s273
        %s275 = smul.u32 32, %s23
        %p276 = scmp.lt.s32.totalorder %s275, 63
        %s277 = scalar_select %p276, %s275, 63
        %s278 = smul.addr %s277, 8
        %s279 = scalar_lea.vmem %s0, %s278
        %s280 = smul.u32 32, %s23
        %s281 = smul.u32 2, %s23
        %v283 = vld [vmem:[%s279] sm:$0xff]
        %v284 = vld [vmem:[%s279 + $0x8] sm:$0xff]
        %v285 = vld [vmem:[%s279 + $0x10] sm:$0xff]
        %v286 = vld [vmem:[%s279 + $0x18] sm:$0xff]
        %v287 = vld [vmem:[%s279 + $0x20] sm:$0xff]
        %v288 = vld [vmem:[%s279 + $0x28] sm:$0xff]
        %v289 = vld [vmem:[%s279 + $0x30] sm:$0xff]
        %v290 = vld [vmem:[%s279 + $0x38] sm:$0xff]
        %v291 = vld [vmem:[%s279 + $0x40] sm:$0xff]
        %v292 = vld [vmem:[%s279 + $0x48] sm:$0xff]
        %v293 = vld [vmem:[%s279 + $0x50] sm:$0xff]
        %v294 = vld [vmem:[%s279 + $0x58] sm:$0xff]
        %v295 = vld [vmem:[%s279 + $0x60] sm:$0xff]
        %v296 = vld [vmem:[%s279 + $0x68] sm:$0xff]
        %v297 = vld [vmem:[%s279 + $0x70] sm:$0xff]
        %v298 = vld [vmem:[%s279 + $0x78] sm:$0xff]
        %v299 = vld [vmem:[%s279 + $0x80] sm:$0xff]
        %v300 = vld [vmem:[%s279 + $0x88] sm:$0xff]
        %v301 = vld [vmem:[%s279 + $0x90] sm:$0xff]
        %v302 = vld [vmem:[%s279 + $0x98] sm:$0xff]
        %v303 = vld [vmem:[%s279 + $0xa0] sm:$0xff]
        %v304 = vld [vmem:[%s279 + $0xa8] sm:$0xff]
        %v305 = vld [vmem:[%s279 + $0xb0] sm:$0xff]
        %v306 = vld [vmem:[%s279 + $0xb8] sm:$0xff]
        %v307 = vld [vmem:[%s279 + $0xc0] sm:$0xff]
        %v308 = vld [vmem:[%s279 + $0xc8] sm:$0xff]
        %v309 = vld [vmem:[%s279 + $0xd0] sm:$0xff]
        %v310 = vld [vmem:[%s279 + $0xd8] sm:$0xff]
        %v311 = vld [vmem:[%s279 + $0xe0] sm:$0xff]
        %v312 = vld [vmem:[%s279 + $0xe8] sm:$0xff]
        %v313 = vld [vmem:[%s279 + $0xf0] sm:$0xff]
        %v314 = vld [vmem:[%s279 + $0xf8] sm:$0xff]
        %v315 = vpack.c.bf16 %v284, %v283
        %v316 = vpack.c.bf16 %v286, %v285
        %v317 = vpack.c.bf16 %v288, %v287
        %v318 = vpack.c.bf16 %v290, %v289
        %v319 = vpack.c.bf16 %v292, %v291
        %v320 = vpack.c.bf16 %v294, %v293
        %v321 = vpack.c.bf16 %v296, %v295
        %v322 = vpack.c.bf16 %v298, %v297
        %v323 = vpack.c.bf16 %v300, %v299
        %v324 = vpack.c.bf16 %v302, %v301
        %v325 = vpack.c.bf16 %v304, %v303
        %v326 = vpack.c.bf16 %v306, %v305
        %v327 = vpack.c.bf16 %v308, %v307
        %v328 = vpack.c.bf16 %v310, %v309
        %v329 = vpack.c.bf16 %v312, %v311
        %v330 = vpack.c.bf16 %v314, %v313
        %v331 = vld [vmem:[%s1] sm:$0xf]
        %v332 = vld [vmem:[%s1 + $0x4] sm:$0xf]
        %v333 = vld [vmem:[%s1 + $0x8] sm:$0xf]
        %v334 = vld [vmem:[%s1 + $0xc] sm:$0xf]
        %v335 = vld [vmem:[%s1 + $0x10] sm:$0xf]
        %v336 = vld [vmem:[%s1 + $0x14] sm:$0xf]
        %v337 = vld [vmem:[%s1 + $0x18] sm:$0xf]
        %v338 = vld [vmem:[%s1 + $0x1c] sm:$0xf]
        %v339 = vld [vmem:[%s2] sm:$0xff]
        %v340 = vld [vmem:[%s2 + $0x8] sm:$0xff]
        %v341 = vld [vmem:[%s2 + $0x10] sm:$0xff]
        %v342 = vld [vmem:[%s2 + $0x18] sm:$0xff]
        %v343 = vld [vmem:[%s2 + $0x20] sm:$0xff]
        %v344 = vld [vmem:[%s2 + $0x28] sm:$0xff]
        %v345 = vld [vmem:[%s2 + $0x30] sm:$0xff]
        %v346 = vld [vmem:[%s2 + $0x38] sm:$0xff]
        %348 = vset.pattern.permute.xlu0 0
        %349 = vperm.xlu0 %348, %v339
        %v350 = vpop.permute.xlu0 %349
        %353 = vset.pattern.permute.xlu0 0
        %354 = vperm.xlu0 %353, %v340
        %v355 = vpop.permute.xlu0 %354
        %358 = vset.pattern.permute.xlu0 0
        %359 = vperm.xlu0 %358, %v341
        %v360 = vpop.permute.xlu0 %359
        %363 = vset.pattern.permute.xlu0 0
        %364 = vperm.xlu0 %363, %v342
        %v365 = vpop.permute.xlu0 %364
        %368 = vset.pattern.permute.xlu0 0
        %369 = vperm.xlu0 %368, %v343
        %v370 = vpop.permute.xlu0 %369
        %373 = vset.pattern.permute.xlu0 0
        %374 = vperm.xlu0 %373, %v344
        %v375 = vpop.permute.xlu0 %374
        %378 = vset.pattern.permute.xlu0 0
        %379 = vperm.xlu0 %378, %v345
        %v380 = vpop.permute.xlu0 %379
        %383 = vset.pattern.permute.xlu0 0
        %384 = vperm.xlu0 %383, %v346
        %v385 = vpop.permute.xlu0 %384
        %v395 = vunpack.c.l.b16 %v331
        %v396 = vunpack.c.l.b16 %v332
        %v397 = vunpack.c.l.b16 %v333
        %v398 = vunpack.c.l.b16 %v334
        %v399 = vunpack.c.l.b16 %v335
        %v400 = vunpack.c.l.b16 %v336
        %v401 = vunpack.c.l.b16 %v337
        %v402 = vunpack.c.l.b16 %v338
        %v403 = vpack.c.b16 %v396, %v395
        %v404 = vpack.c.b16 %v398, %v397
        %v405 = vpack.c.b16 %v400, %v399
        %v406 = vpack.c.b16 %v402, %v401
        %vm407 = vcmask 261120
        %v409 = vsel %vm407, %v403, 0
        %v412 = vsel %vm407, %v404, 0
        %v415 = vsel %vm407, %v405, 0
        %v418 = vsel %vm407, %v406, 0
        %v421 = vsel %vm407, %v315, 0
        %v424 = vsel %vm407, %v316, 0
        %v427 = vsel %vm407, %v317, 0
        %v430 = vsel %vm407, %v318, 0
        %v433 = vsel %vm407, %v319, 0
        %v436 = vsel %vm407, %v320, 0
        %v439 = vsel %vm407, %v321, 0
        %v442 = vsel %vm407, %v322, 0
        %v445 = vsel %vm407, %v323, 0
        %v448 = vsel %vm407, %v324, 0
        %v451 = vsel %vm407, %v325, 0
        %v454 = vsel %vm407, %v326, 0
        %v457 = vsel %vm407, %v327, 0
        %v460 = vsel %vm407, %v328, 0
        %v463 = vsel %vm407, %v329, 0
        %v466 = vsel %vm407, %v330, 0
        %468 = vmatprep.subr.bf16.mxu0 0
        %469 = vmatpush1.bf16.xpose.msra.mxu0 %v442
        %470 = vmatprep.subr.bf16.mxu0 0
        %471 = vmatpush1.bf16.xpose.msra.mxu0 %v439
        %472 = vmatprep.subr.bf16.mxu0 0
        %473 = vmatpush1.bf16.xpose.msra.mxu0 %v436
        %474 = vmatprep.subr.bf16.mxu0 0
        %475 = vmatpush1.bf16.xpose.msra.mxu0 %v433
        %476 = vmatprep.subr.bf16.mxu0 0
        %477 = vmatpush1.bf16.xpose.msra.mxu0 %v430
        %478 = vmatprep.subr.bf16.mxu0 0
        %479 = vmatpush1.bf16.xpose.msra.mxu0 %v427
        %480 = vmatprep.subr.bf16.mxu0 0
        %481 = vmatpush1.bf16.xpose.msra.mxu0 %v424
        %482 = vmatprep.subr.bf16.mxu0 0
        %483 = vmatpush1.bf16.xpose.msra.mxu0 %v421
        %484 = vmatprep.subr.bf16.mxu0 0
        %485 = vmatpush2.bf16.xpose.msra.mxu0 %v466
        %486 = vmatprep.subr.bf16.mxu0 0
        %487 = vmatpush2.bf16.xpose.msra.mxu0 %v463
        %488 = vmatprep.subr.bf16.mxu0 0
        %489 = vmatpush2.bf16.xpose.msra.mxu0 %v460
        %490 = vmatprep.subr.bf16.mxu0 0
        %491 = vmatpush2.bf16.xpose.msra.mxu0 %v457
        %492 = vmatprep.subr.bf16.mxu0 0
        %493 = vmatpush2.bf16.xpose.msra.mxu0 %v454
        %494 = vmatprep.subr.bf16.mxu0 0
        %495 = vmatpush2.bf16.xpose.msra.mxu0 %v451
        %496 = vmatprep.subr.bf16.mxu0 0
        %497 = vmatpush2.bf16.xpose.msra.mxu0 %v448
        %498 = vmatprep.subr.bf16.mxu0 0
        %499 = vmatpush2.bf16.xpose.msra.mxu0 %v445
        %500 = vmatprep.mubr.bf16.mxu0 0
        %501 = vmatmul.mubr.bf16.gmra.mxu0 %v409
        %v502 = vpop.f32.mrf.mxu0
        %v503 = vadd.f32 %v350, %v502
        %v504 = vpop.f32.mrf.mxu0
        %v505 = vadd.f32 %v350, %v504
        %v506 = vpop.f32.mrf.mxu0
        %v507 = vadd.f32 %v355, %v506
        %v508 = vpop.f32.mrf.mxu0
        %v509 = vadd.f32 %v355, %v508
        %510 = vmatprep.mubr.bf16.mxu0 0
        %511 = vmatmul.mubr.bf16.gmra.mxu0 %v412
        %v512 = vpop.f32.mrf.mxu0
        %v513 = vadd.f32 %v360, %v512
        %v514 = vpop.f32.mrf.mxu0
        %v515 = vadd.f32 %v360, %v514
        %v516 = vpop.f32.mrf.mxu0
        %v517 = vadd.f32 %v365, %v516
        %v518 = vpop.f32.mrf.mxu0
        %v519 = vadd.f32 %v365, %v518
        %520 = vmatprep.mubr.bf16.mxu0 0
        %521 = vmatmul.mubr.bf16.gmra.mxu0 %v415
        %v522 = vpop.f32.mrf.mxu0
        %v523 = vadd.f32 %v370, %v522
        %v524 = vpop.f32.mrf.mxu0
        %v525 = vadd.f32 %v370, %v524
        %v526 = vpop.f32.mrf.mxu0
        %v527 = vadd.f32 %v375, %v526
        %v528 = vpop.f32.mrf.mxu0
        %v529 = vadd.f32 %v375, %v528
        %530 = vmatprep.mubr.bf16.mxu0 0
        %531 = vmatmul.mubr.bf16.gmra.mxu0 %v418
        %v532 = vpop.f32.mrf.mxu0
        %v533 = vadd.f32 %v380, %v532
        %v534 = vpop.f32.mrf.mxu0
        %v535 = vadd.f32 %v380, %v534
        %v536 = vpop.f32.mrf.mxu0
        %v537 = vadd.f32 %v385, %v536
        %v538 = vpop.f32.mrf.mxu0
        %v539 = vadd.f32 %v385, %v538
        %540 = vdwg.mxu0
        %v541 = vtanh.pop %v503
        %v542 = vtanh.pop %v505
        %v543 = vtanh.pop %v507
        %v544 = vtanh.pop %v509
        %v545 = vtanh.pop %v513
        %v546 = vtanh.pop %v515
        %v547 = vtanh.pop %v517
        %v548 = vtanh.pop %v519
        %v549 = vtanh.pop %v523
        %v550 = vtanh.pop %v525
        %v551 = vtanh.pop %v527
        %v552 = vtanh.pop %v529
        %v553 = vtanh.pop %v533
        %v554 = vtanh.pop %v535
        %v555 = vtanh.pop %v537
        %v556 = vtanh.pop %v539
        %v557 = vld [vmem:[%s3] sm:$0xf]
        %v558 = vld [vmem:[%s3 + $0x4] sm:$0xf]
        %v559 = vld [vmem:[%s3 + $0x8] sm:$0xf]
        %v560 = vld [vmem:[%s3 + $0xc] sm:$0xf]
        %v561 = vld [vmem:[%s3 + $0x10] sm:$0xf]
        %v562 = vld [vmem:[%s3 + $0x14] sm:$0xf]
        %v563 = vld [vmem:[%s3 + $0x18] sm:$0xf]
        %v564 = vld [vmem:[%s3 + $0x1c] sm:$0xf]
        %v565 = vpack.c.bf16 %v543, %v541
        %v566 = vpack.c.bf16 %v544, %v542
        %v567 = vpack.c.bf16 %v547, %v545
        %v568 = vpack.c.bf16 %v548, %v546
        %v569 = vpack.c.bf16 %v551, %v549
        %v570 = vpack.c.bf16 %v552, %v550
        %v571 = vpack.c.bf16 %v555, %v553
        %v572 = vpack.c.bf16 %v556, %v554
        %v573 = vld [vmem:[%s4] sm:$0xff]
        %v574 = vld [vmem:[%s4 + $0x8] sm:$0xff]
        %v575 = vld [vmem:[%s4 + $0x10] sm:$0xff]
        %v576 = vld [vmem:[%s4 + $0x18] sm:$0xff]
        %v577 = vld [vmem:[%s4 + $0x20] sm:$0xff]
        %v578 = vld [vmem:[%s4 + $0x28] sm:$0xff]
        %v579 = vld [vmem:[%s4 + $0x30] sm:$0xff]
        %v580 = vld [vmem:[%s4 + $0x38] sm:$0xff]
        %582 = vset.pattern.permute.xlu0 0
        %583 = vperm.xlu0 %582, %v573
        %v584 = vpop.permute.xlu0 %583
        %587 = vset.pattern.permute.xlu0 0
        %588 = vperm.xlu0 %587, %v574
        %v589 = vpop.permute.xlu0 %588
        %592 = vset.pattern.permute.xlu0 0
        %593 = vperm.xlu0 %592, %v575
        %v594 = vpop.permute.xlu0 %593
        %597 = vset.pattern.permute.xlu0 0
        %598 = vperm.xlu0 %597, %v576
        %v599 = vpop.permute.xlu0 %598
        %602 = vset.pattern.permute.xlu0 0
        %603 = vperm.xlu0 %602, %v577
        %v604 = vpop.permute.xlu0 %603
        %607 = vset.pattern.permute.xlu0 0
        %608 = vperm.xlu0 %607, %v578
        %v609 = vpop.permute.xlu0 %608
        %612 = vset.pattern.permute.xlu0 0
        %613 = vperm.xlu0 %612, %v579
        %v614 = vpop.permute.xlu0 %613
        %617 = vset.pattern.permute.xlu0 0
        %618 = vperm.xlu0 %617, %v580
        %v619 = vpop.permute.xlu0 %618
        %v629 = vunpack.c.l.b16 %v557
        %v630 = vunpack.c.l.b16 %v558
        %v631 = vunpack.c.l.b16 %v559
        %v632 = vunpack.c.l.b16 %v560
        %v633 = vunpack.c.l.b16 %v561
        %v634 = vunpack.c.l.b16 %v562
        %v635 = vunpack.c.l.b16 %v563
        %v636 = vunpack.c.l.b16 %v564
        %v637 = vpack.c.b16 %v630, %v629
        %v638 = vpack.c.b16 %v632, %v631
        %v639 = vpack.c.b16 %v634, %v633
        %v640 = vpack.c.b16 %v636, %v635
        %vm641 = vcmask 523264
        %v643 = vsel %vm641, %v637, 0
        %v646 = vsel %vm641, %v638, 0
        %v649 = vsel %vm641, %v639, 0
        %v652 = vsel %vm641, %v640, 0
        %654 = vmatprep.subr.bf16.mxu0 0
        %655 = vmatpush1.bf16.msra.mxu0 0
        %656 = vmatprep.subr.bf16.mxu0 0
        %657 = vmatpush1.bf16.msra.mxu0 0
        %658 = vmatprep.subr.bf16.mxu0 0
        %659 = vmatpush1.bf16.msra.mxu0 0
        %660 = vmatprep.subr.bf16.mxu0 0
        %661 = vmatpush1.bf16.msra.mxu0 0
        %662 = vmatprep.subr.bf16.mxu0 %v572
        %663 = vmatpush1.bf16.msra.mxu0 %v571
        %664 = vmatprep.subr.bf16.mxu0 %v570
        %665 = vmatpush1.bf16.msra.mxu0 %v569
        %666 = vmatprep.subr.bf16.mxu0 %v568
        %667 = vmatpush1.bf16.msra.mxu0 %v567
        %668 = vmatprep.subr.bf16.mxu0 %v566
        %669 = vmatpush1.bf16.msra.mxu0 %v565
        %670 = vmatprep.subr.bf16.mxu0 0
        %671 = vmatpush2.bf16.msra.mxu0 0
        %672 = vmatprep.subr.bf16.mxu0 0
        %673 = vmatpush2.bf16.msra.mxu0 0
        %674 = vmatprep.subr.bf16.mxu0 0
        %675 = vmatpush2.bf16.msra.mxu0 0
        %676 = vmatprep.subr.bf16.mxu0 0
        %677 = vmatpush2.bf16.msra.mxu0 0
        %678 = vmatprep.subr.bf16.mxu0 0
        %679 = vmatpush2.bf16.msra.mxu0 0
        %680 = vmatprep.subr.bf16.mxu0 0
        %681 = vmatpush2.bf16.msra.mxu0 0
        %682 = vmatprep.subr.bf16.mxu0 0
        %683 = vmatpush2.bf16.msra.mxu0 0
        %684 = vmatprep.subr.bf16.mxu0 0
        %685 = vmatpush2.bf16.msra.mxu0 0
        %686 = vmatprep.mubr.bf16.mxu0 0
        %687 = vmatmul.mubr.bf16.gmra.mxu0 %v643
        %v688 = vpop.f32.mrf.mxu0
        %v689 = vadd.f32 %v584, %v688
        %v690 = vpop.f32.mrf.mxu0
        %v691 = vadd.f32 %v584, %v690
        %v692 = vpop.f32.mrf.mxu0
        %v693 = vadd.f32 %v589, %v692
        %v694 = vpop.f32.mrf.mxu0
        %v695 = vadd.f32 %v589, %v694
        %696 = vmatprep.mubr.bf16.mxu0 0
        %697 = vmatmul.mubr.bf16.gmra.mxu0 %v646
        %v698 = vpop.f32.mrf.mxu0
        %v699 = vadd.f32 %v594, %v698
        %v700 = vpop.f32.mrf.mxu0
        %v701 = vadd.f32 %v594, %v700
        %v702 = vpop.f32.mrf.mxu0
        %v703 = vadd.f32 %v599, %v702
        %v704 = vpop.f32.mrf.mxu0
        %v705 = vadd.f32 %v599, %v704
        %706 = vmatprep.mubr.bf16.mxu0 0
        %707 = vmatmul.mubr.bf16.gmra.mxu0 %v649
        %v708 = vpop.f32.mrf.mxu0
        %v709 = vadd.f32 %v604, %v708
        %v710 = vpop.f32.mrf.mxu0
        %v711 = vadd.f32 %v604, %v710
        %v712 = vpop.f32.mrf.mxu0
        %v713 = vadd.f32 %v609, %v712
        %v714 = vpop.f32.mrf.mxu0
        %v715 = vadd.f32 %v609, %v714
        %716 = vmatprep.mubr.bf16.mxu0 0
        %717 = vmatmul.mubr.bf16.gmra.mxu0 %v652
        %v718 = vpop.f32.mrf.mxu0
        %v719 = vadd.f32 %v614, %v718
        %v720 = vpop.f32.mrf.mxu0
        %v721 = vadd.f32 %v614, %v720
        %v722 = vpop.f32.mrf.mxu0
        %v723 = vadd.f32 %v619, %v722
        %v724 = vpop.f32.mrf.mxu0
        %v725 = vadd.f32 %v619, %v724
        %726 = vdwg.mxu0
        %v727 = vtanh.pop %v689
        %v728 = vtanh.pop %v691
        %v729 = vtanh.pop %v693
        %v730 = vtanh.pop %v695
        %v731 = vtanh.pop %v699
        %v732 = vtanh.pop %v701
        %v733 = vtanh.pop %v703
        %v734 = vtanh.pop %v705
        %v735 = vtanh.pop %v709
        %v736 = vtanh.pop %v711
        %v737 = vtanh.pop %v713
        %v738 = vtanh.pop %v715
        %v739 = vtanh.pop %v719
        %v740 = vtanh.pop %v721
        %v741 = vtanh.pop %v723
        %v742 = vtanh.pop %v725
        %v743 = vld [vmem:[%s5] sm:$0x1]
        %v744 = vpack.c.bf16 %v729, %v727
        %v745 = vpack.c.bf16 %v730, %v728
        %v746 = vpack.c.bf16 %v733, %v731
        %v747 = vpack.c.bf16 %v734, %v732
        %v748 = vpack.c.bf16 %v737, %v735
        %v749 = vpack.c.bf16 %v738, %v736
        %v750 = vpack.c.bf16 %v741, %v739
        %v751 = vpack.c.bf16 %v742, %v740
        %v752 = vld [vmem:[#allocation2] sm:$0x1]
        %754 = vset.pattern.permute.xlu0 0
        %755 = vperm.xlu0 %754, %v752
        %v756 = vpop.permute.xlu0 %755
        %v758 = vlaneseq
        %v759 = vshrl.u32 %v758, 7
        %v760 = vsub.s32 0, %v759
        %v761 = vrot.slane %v756, %v760
        %v763 = vsel %vm641, %v743, 0
        %765 = vmatprep.subr.bf16.mxu0 0
        %766 = vmatpush1.bf16.msra.mxu0 0
        %767 = vmatprep.subr.bf16.mxu0 0
        %768 = vmatpush1.bf16.msra.mxu0 0
        %769 = vmatprep.subr.bf16.mxu0 0
        %770 = vmatpush1.bf16.msra.mxu0 0
        %771 = vmatprep.subr.bf16.mxu0 0
        %772 = vmatpush1.bf16.msra.mxu0 0
        %773 = vmatprep.subr.bf16.mxu0 %v751
        %774 = vmatpush1.bf16.msra.mxu0 %v750
        %775 = vmatprep.subr.bf16.mxu0 %v749
        %776 = vmatpush1.bf16.msra.mxu0 %v748
        %777 = vmatprep.subr.bf16.mxu0 %v747
        %778 = vmatpush1.bf16.msra.mxu0 %v746
        %779 = vmatprep.subr.bf16.mxu0 %v745
        %780 = vmatpush1.bf16.msra.mxu0 %v744
        %781 = vmatprep.subr.bf16.mxu0 0
        %782 = vmatpush2.bf16.msra.mxu0 0
        %783 = vmatprep.subr.bf16.mxu0 0
        %784 = vmatpush2.bf16.msra.mxu0 0
        %785 = vmatprep.subr.bf16.mxu0 0
        %786 = vmatpush2.bf16.msra.mxu0 0
        %787 = vmatprep.subr.bf16.mxu0 0
        %788 = vmatpush2.bf16.msra.mxu0 0
        %789 = vmatprep.subr.bf16.mxu0 0
        %790 = vmatpush2.bf16.msra.mxu0 0
        %791 = vmatprep.subr.bf16.mxu0 0
        %792 = vmatpush2.bf16.msra.mxu0 0
        %793 = vmatprep.subr.bf16.mxu0 0
        %794 = vmatpush2.bf16.msra.mxu0 0
        %795 = vmatprep.subr.bf16.mxu0 0
        %796 = vmatpush2.bf16.msra.mxu0 0
        %797 = vmatprep.mubr.bf16.mxu0 0
        %798 = vmatmul.mubr.bf16.gmra.mxu0 %v763
        %v799 = vpop.f32.mrf.mxu0
        %v800 = vadd.f32 %v761, %v799
        %v801 = vpop.f32.mrf.mxu0
        %v802 = vadd.f32 %v761, %v801
        %v803 = vpop.f32.mrf.mxu0
        %v804 = vpop.f32.mrf.mxu0
        %805 = vdwg.mxu0
        %v808 = vcombine.low %v800, %v802
        %v810 = vunpack.c.l.s4 1966171168
        %v811 = vunpack.c.0.s8 %v810
        %v812 = vlaneseq
        %v813 = vshrl.u32 %v812, 7
        %v814 = vsub.s32 %v811, %v813
        %v815 = vrot.slane %v808, %v814
        %v817 = vunpack.c.l.s4 1966171168
        %v818 = vunpack.c.0.s8 %v817
        %v819 = vlaneseq
        %v820 = vshrl.u32 %v819, 7
        %v821 = vsub.s32 %v818, %v820
        %v822 = vrot.slane %v815, %v821
        %v824 = vlaneseq
        %vm825 = vcmp.ge.s32.totalorder %v824, 0
        %vm826 = vcmp.lt.s32.totalorder %v824, 256
        %vm827 = vmand %vm825, %vm826
        %828 = vst.msk [vmem:[%s274] sm:$0x3] %vm827, %v822
        %s829 = sand.u32 %s183, 1
        %s830 = scalar_lea.sflag [#allocation4], %s829
        %s831 = sand.u32 %s183, 1
        %s832 = smul.addr %s831, 2
        %s833 = scalar_lea.vmem [#allocation3], %s832
        // Predicated region
        $region49: #{tpu_custom_call.1} parent=47 // pred_check
          %p834 = pneg %p193
        $region50: #{tpu_custom_call.1} parent=47 // pred_check_branch
          %836 = sbr.rel (%p834) target = $region52
        $region51: #{tpu_custom_call.1} parent=47 // pred_region
          %s837 = smul.u32 2, %s23
          %s839 = ssub.s32 32, 32
          %840 = vsyncadd %s830, %s839
          %s841 = smul.addr %s837, 16
          %s842 = scalar_lea.hbm %s7, %s841
          %s844 = sshll.u32 %s833, 4
          %s845 = int_to_ptr.vmem [resolvable:$true] %s844
          %847 = dma.vmem_to_hbm [thread:$0]  %s845, 32, %s842, %s830
        $region52: #{tpu_custom_call.1} parent=47 // pred_fallthru
          _
      $region48: #{tpu_custom_call.1} parent=5 // pred_fallthru
        _
      %p848 = scmp.le.s32.totalorder 2, %s18
      // Predicated region
      $region53: #{tpu_custom_call.1} parent=5 // pred_check
        %p849 = pneg %p848
      $region54: #{tpu_custom_call.1} parent=5 // pred_check_branch
        %851 = sbr.rel (%p849) target = $region56
      $region55: #{tpu_custom_call.1} parent=5 // pred_region
        %s852 = ssub.s32 %s18, 2
        // Predicated region
        $region57: #{tpu_custom_call.1} parent=55 // pred_check
          %p853 = pneg %p199
        $region58: #{tpu_custom_call.1} parent=55 // pred_check_branch
          %855 = sbr.rel (%p853) target = $region60
        $region59: #{tpu_custom_call.1} parent=55 // pred_region
          %s856 = sand.u32 %s184, 1
          %s857 = scalar_lea.sflag [#allocation4], %s856
          %s858 = sand.u32 %s184, 1
          %s859 = smul.addr %s858, 2
          %s860 = scalar_lea.vmem [#allocation3], %s859
          %861 = dma.done %s857, 32
        $region60: #{tpu_custom_call.1} parent=55 // pred_fallthru
          _
      $region56: #{tpu_custom_call.1} parent=5 // pred_fallthru
        _
    $region6: #{tpu_custom_call.1} parent=1 // loop_footer
      %s22 = sadd.s32 1, %s18
    $region7: #{tpu_custom_call.1} parent=1 // loop_footer_branch
      %17 = sbr.rel target = $region3
    $region8: #{tpu_custom_call.1} parent=1 // loop_exit
      _
    %862 = vsyncpa [#allocation4], 1
    %s863 = scalar_lea.sflag [#allocation4], 1
    %864 = vsyncpa %s863, 1

</llo_original>
